<compile_context>
chip_gen: v5e
topology: v5e:2x2
jax: 0.10.0
libtpu: 0.0.40
codegen_flags: <defaults>
</compile_context>

<pallas_src>
import functools
import math

import jax
import jax.numpy as jnp
from jax import lax
from jax.experimental import pallas as pl
from jax.experimental.pallas import tpu as pltpu

MAX_LANE_TILE = 2048   # lane-dim tile (multiple of 128)
MAX_D_TILE = 512       # reduction-axis tile (multiple of 8)
VMEM_LIMIT_BYTES = 32 * 1024 * 1024


def _round_up(x, m):
    return ((x + m - 1) // m) * m


def _mean_mid_kernel(x_ref, o_ref, acc_ref, *, num_k, d_tile, d_rem, inv_d):
    """Reduce the middle axis of an (outer, d, inner) array.

    x_ref  : (1, d_tile, Lt) input block
    o_ref  : (1, 1, Lt)      output block (same block across the k axis)
    acc_ref: (1, 1, Lt) f32  running sum (persists across the reduction axis)
    """
    k = pl.program_id(2)

    @pl.when(k == 0)
    def _init():
        acc_ref[...] = jnp.zeros_like(acc_ref)

    x = x_ref[...].astype(jnp.float32)
    if d_rem != 0:
        # Last reduction block is ragged: zero rows past the true extent so
        # stale VMEM contents cannot pollute the sum.
        row = lax.broadcasted_iota(jnp.int32, x.shape, dimension=1)
        limit = jnp.where(k == num_k - 1, d_rem, d_tile)
        x = jnp.where(row < limit, x, 0.0)
    acc_ref[...] += jnp.sum(x, axis=1, keepdims=True)

    @pl.when(k == num_k - 1)
    def _finalize():
        o_ref[...] = (acc_ref[...] * inv_d).astype(o_ref.dtype)


def _mean_last_kernel(x_ref, o_ref, acc_ref, *, num_k, lane_tile, d_rem, inv_d):
    """Reduce the trailing (lane) axis of an (outer, d) array.

    x_ref  : (Rt, Lt) input block
    o_ref  : (Rt, 1)  output block
    acc_ref: (Rt, 1) f32 running sum
    """
    k = pl.program_id(1)

    @pl.when(k == 0)
    def _init():
        acc_ref[...] = jnp.zeros_like(acc_ref)

    x = x_ref[...].astype(jnp.float32)
    if d_rem != 0:
        col = lax.broadcasted_iota(jnp.int32, x.shape, dimension=1)
        limit = jnp.where(k == num_k - 1, d_rem, lane_tile)
        x = jnp.where(col < limit, x, 0.0)
    acc_ref[...] += jnp.sum(x, axis=1, keepdims=True)

    @pl.when(k == num_k - 1)
    def _finalize():
        o_ref[...] = (acc_ref[...] * inv_d).astype(o_ref.dtype)


def global_avg_pooling(x, dim=0):
    """Pallas TPU equivalent of torch: x.mean(dim=dim)."""
    x = jnp.asarray(x)
    ndim = x.ndim
    dim = dim % ndim
    # torch.mean requires a floating dtype; keep float inputs' dtype, promote others.
    out_dtype = x.dtype if jnp.issubdtype(x.dtype, jnp.floating) else jnp.float32

    d = x.shape[dim]
    inv_d = 1.0 / float(d)
    out_shape_final = x.shape[:dim] + x.shape[dim + 1:]
    outer = math.prod(x.shape[:dim])
    inner = math.prod(x.shape[dim + 1:])

    if inner > 1:
        # Contiguous reshape (no HBM copy): reduce the middle axis in-kernel.
        x3 = x.reshape(outer, d, inner)
        lane_tile = min(MAX_LANE_TILE, _round_up(inner, 128))
        d_tile = d if d <= MAX_D_TILE else MAX_D_TILE
        num_k = pl.cdiv(d, d_tile)
        d_rem = d % d_tile
        grid = (outer, pl.cdiv(inner, lane_tile), num_k)

        kernel = functools.partial(
            _mean_mid_kernel, num_k=num_k, d_tile=d_tile, d_rem=d_rem, inv_d=inv_d)
        out = pl.pallas_call(
            kernel,
            out_shape=jax.ShapeDtypeStruct((outer, 1, inner), out_dtype),
            grid_spec=pltpu.PrefetchScalarGridSpec(
                num_scalar_prefetch=0,
                grid=grid,
                in_specs=[pl.BlockSpec((1, d_tile, lane_tile),
                                       lambda o, j, k: (o, k, j))],
                out_specs=pl.BlockSpec((1, 1, lane_tile),
                                       lambda o, j, k: (o, 0, j)),
                scratch_shapes=[pltpu.VMEM((1, 1, lane_tile), jnp.float32)],
            ),
            compiler_params=pltpu.CompilerParams(
                dimension_semantics=("parallel", "parallel", "arbitrary"),
                vmem_limit_bytes=VMEM_LIMIT_BYTES,
            ),
        )(x3)
        return out.reshape(out_shape_final)

    # dim is the trailing axis (or x is 1-D): reduce over lanes.
    x2 = x.reshape(outer, d)
    lane_tile = min(MAX_LANE_TILE, _round_up(d, 128))
    row_tile = outer if outer <= 256 else 256
    num_k = pl.cdiv(d, lane_tile)
    d_rem = d % lane_tile
    grid = (pl.cdiv(outer, row_tile), num_k)

    kernel = functools.partial(
        _mean_last_kernel, num_k=num_k, lane_tile=lane_tile, d_rem=d_rem, inv_d=inv_d)
    out = pl.pallas_call(
        kernel,
        out_shape=jax.ShapeDtypeStruct((outer, 1), out_dtype),
        grid_spec=pltpu.PrefetchScalarGridSpec(
            num_scalar_prefetch=0,
            grid=grid,
            in_specs=[pl.BlockSpec((row_tile, lane_tile), lambda i, k: (i, k))],
            out_specs=pl.BlockSpec((row_tile, 1), lambda i, k: (i, 0)),
            scratch_shapes=[pltpu.VMEM((row_tile, 1), jnp.float32)],
        ),
        compiler_params=pltpu.CompilerParams(
            dimension_semantics=("parallel", "arbitrary"),
            vmem_limit_bytes=VMEM_LIMIT_BYTES,
        ),
    )(x2)
    return out.reshape(out_shape_final)


if __name__ == "__main__":
    key = jax.random.PRNGKey(0)
    k0, k1, k2 = jax.random.split(key, 3)

    # Primary case: NCHW-style input with the module default dim=0.
    x = jax.random.normal(k0, (2, 4, 16, 16), dtype=jnp.float32)
    y = jax.block_until_ready(global_avg_pooling(x, dim=0))
    y_ref = jnp.mean(x, axis=0)
    assert y.shape == y_ref.shape == (4, 16, 16)
    assert jnp.allclose(y, y_ref, atol=1e-5, rtol=1e-5)

    # Middle-axis reduction with the reduce dim tiled across the grid
    # (d=600 > MAX_D_TILE -> accumulator path + masked ragged tail).
    x2 = jax.random.normal(k1, (3, 600, 4, 8), dtype=jnp.float32)
    y2 = jax.block_until_ready(global_avg_pooling(x2, dim=1))
    assert jnp.allclose(y2, jnp.mean(x2, axis=1), atol=1e-4, rtol=1e-4)

    # Trailing-axis reduction (lane-reduce kernel, ragged lanes masked).
    x3 = jax.random.normal(k2, (6, 50), dtype=jnp.float32)
    y3 = jax.block_until_ready(global_avg_pooling(x3, dim=1))
    assert jnp.allclose(y3, jnp.mean(x3, axis=1), atol=1e-5, rtol=1e-5)

    print("KERNEL_OK")
</pallas_src>

<mosaic_0001>
module attributes {stable_mosaic.version = 11 : i64} {
  func.func @_mean_mid_kernel(%arg0: i32, %arg1: i32, %arg2: i32, %arg3: memref<1x2x1024xf32, #tpu.memory_space<vmem>>, %arg4: memref<1x1x1024xf32, #tpu.memory_space<vmem>>, %arg5: memref<1x1x1024xf32, #tpu.memory_space<vmem>>) attributes {dimension_semantics = [#tpu.dimension_semantics<parallel>, #tpu.dimension_semantics<parallel>, #tpu.dimension_semantics<arbitrary>], iteration_bounds = array<i64: 1, 1, 1>, scalar_prefetch = 0 : i64, scratch_operands = 1 : i64, tpu.core_type = #tpu.core_type<tc>, window_params = [{transform_indices = @transform_0, window_bounds = array<i64: 1, 2, 1024>}, {transform_indices = @transform_1, window_bounds = array<i64: 1, 1, 1024>}]} {
    %c0_i32 = arith.constant 0 : i32
    %0 = arith.cmpi eq, %arg2, %c0_i32 : i32
    %1 = arith.extui %0 : i1 to i32
    %c0_i32_0 = arith.constant 0 : i32
    %2 = arith.cmpi ne, %1, %c0_i32_0 : i32
    scf.if %2 {
      %cst_11 = arith.constant 0.000000e+00 : f32
      %12 = vector.broadcast %cst_11 : f32 to vector<1x1x1024xf32>
      %c0_12 = arith.constant 0 : index
      %c0_13 = arith.constant 0 : index
      %c0_14 = arith.constant 0 : index
      %13 = vector.load %arg5[%c0_12, %c0_13, %c0_14] : memref<1x1x1024xf32, #tpu.memory_space<vmem>>, vector<1x1x1024xf32>
      tpu.vector_store %arg5[%c0_12, %c0_13, %c0_14], %12 {strides = array<i32>} : memref<1x1x1024xf32, #tpu.memory_space<vmem>>, vector<1x1x1024xf32>,
    } else {
    }
    %c0 = arith.constant 0 : index
    %c0_1 = arith.constant 0 : index
    %c0_2 = arith.constant 0 : index
    %3 = vector.load %arg3[%c0, %c0_1, %c0_2] : memref<1x2x1024xf32, #tpu.memory_space<vmem>>, vector<1x2x1024xf32>
    %c0_3 = arith.constant 0 : index
    %c0_4 = arith.constant 0 : index
    %c0_5 = arith.constant 0 : index
    %4 = vector.load %arg5[%c0_3, %c0_4, %c0_5] : memref<1x1x1024xf32, #tpu.memory_space<vmem>>, vector<1x1x1024xf32>
    %cst = arith.constant dense<0.000000e+00> : vector<1x1024xf32>
    %5 = vector.multi_reduction <add>, %3, %cst [1] : vector<1x2x1024xf32> to vector<1x1024xf32>
    %6 = vector.shape_cast %5 : vector<1x1024xf32> to vector<1x1x1024xf32>
    %7 = arith.addf %4, %6 : vector<1x1x1024xf32>
    %c0_6 = arith.constant 0 : index
    %c0_7 = arith.constant 0 : index
    %c0_8 = arith.constant 0 : index
    %8 = vector.load %arg5[%c0_6, %c0_7, %c0_8] : memref<1x1x1024xf32, #tpu.memory_space<vmem>>, vector<1x1x1024xf32>
    tpu.vector_store %arg5[%c0_6, %c0_7, %c0_8], %7 {strides = array<i32>} : memref<1x1x1024xf32, #tpu.memory_space<vmem>>, vector<1x1x1024xf32>,
    %c0_i32_9 = arith.constant 0 : i32
    %9 = arith.cmpi eq, %arg2, %c0_i32_9 : i32
    %10 = arith.extui %9 : i1 to i32
    %c0_i32_10 = arith.constant 0 : i32
    %11 = arith.cmpi ne, %10, %c0_i32_10 : i32
    scf.if %11 {
      %c0_11 = arith.constant 0 : index
      %c0_12 = arith.constant 0 : index
      %c0_13 = arith.constant 0 : index
      %12 = vector.load %arg5[%c0_11, %c0_12, %c0_13] : memref<1x1x1024xf32, #tpu.memory_space<vmem>>, vector<1x1x1024xf32>
      %cst_14 = arith.constant 5.000000e-01 : f32
      %13 = vector.broadcast %cst_14 : f32 to vector<1x1x1024xf32>
      %14 = arith.mulf %12, %13 : vector<1x1x1024xf32>
      %c0_15 = arith.constant 0 : index
      %c0_16 = arith.constant 0 : index
      %c0_17 = arith.constant 0 : index
      %15 = vector.load %arg4[%c0_15, %c0_16, %c0_17] : memref<1x1x1024xf32, #tpu.memory_space<vmem>>, vector<1x1x1024xf32>
      tpu.vector_store %arg4[%c0_15, %c0_16, %c0_17], %14 {strides = array<i32>} : memref<1x1x1024xf32, #tpu.memory_space<vmem>>, vector<1x1x1024xf32>,
    } else {
    }
    return
  }
  func.func @transform_0(%arg0: i32, %arg1: i32, %arg2: i32) -> (i32, i32, i32) {
    %c0_i32 = arith.constant 0 : i32
    return %arg0, %arg2, %arg1 : i32, i32, i32
  }
  func.func @transform_1(%arg0: i32, %arg1: i32, %arg2: i32) -> (i32, i32, i32) {
    %c0_i32 = arith.constant 0 : i32
    %c0_i32_0 = arith.constant 0 : i32
    return %arg0, %c0_i32, %arg1 : i32, i32, i32
  }
}

</mosaic_0001>

<llo_original>
// kernel: tpu_custom_call.1
$region0: #{tpu_custom_call.1}
  #allocation0 [shape = 'u32[]', space=smem, size = 0x4, offset = 0x4, fixed_abs, tag = 'smem constant byte address 0x4 - core index']
  #allocation1 [shape = 'u32[72,128]{1,0:T(1,128)}', space=vmem, size = 0x9000, scoped, tag = 'internal scratch']
  #allocation2 [shape = 'f32[1,1,1024]{2,1,0:T(1,128)}', space=vmem, size = 0x1000, scoped, tag = 'scratch operand']
  %s0 = inlined_call_operand.hbm [shape: f32[1,2,1024], index: 0, kind: input, shape index: {}]
  %s1 = inlined_call_operand.hbm [shape: f32[1,1,1024], index: 1, kind: output, shape index: {}]
  %s2 = sld [smem:[#allocation0]]
  $region26: #{tpu_custom_call.1} parent=0
    _
  %s4 = ssub.s32 1, %s2
  %s5 = scalar_select 0, %s4, %s2
  $region1: #{tpu_custom_call.1} parent=0
    #allocation3 [shape = 'u8[8192]{0}', space=vmem, size = 0x2000, scoped, tag = 'input window, operand 0, single buffered']
    #allocation4 [shape = 's32[1]{0}', space=sflag, size = 0x4, scoped, tag = 'scoped memory for tpu_custom_call.1']
    #allocation5 [shape = 's32[1]{0}', space=sflag, size = 0x4, scoped, tag = 'scoped memory for tpu_custom_call.1']
    #allocation6 [shape = 'u8[4096]{0}', space=vmem, size = 0x1000, scoped, tag = 'output window, operand 0, single buffered']
    %6 = vsyncpa [#allocation4], 0
    %7 = vsyncpa [#allocation5], 0
    // Predicated region
    $region2: #{tpu_custom_call.1} parent=1 // pred_check
      _
    $region3: #{tpu_custom_call.1} parent=1 // pred_check_branch
      %9 = sbr.rel (0) target = $region5
    $region4: #{tpu_custom_call.1} parent=1 // pred_region
      %11 = vsyncadd [#allocation4], 0
      %s13 = sshll.u32 %s0, 4
      %s14 = int_to_ptr.hbm [resolvable:$true] %s13
      %s15 = sshll.u32 [#allocation3], 4
      %s16 = int_to_ptr.vmem [resolvable:$true] %s15
      %18 = dma.hbm_to_vmem [thread:$0]  %s14, 256, %s16, [#allocation4]
    $region5: #{tpu_custom_call.1} parent=1 // pred_fallthru
      _
    // Predicated region
    $region6: #{tpu_custom_call.1} parent=1 // pred_check
      _
    $region7: #{tpu_custom_call.1} parent=1 // pred_check_branch
      %20 = sbr.rel (0) target = $region9
    $region8: #{tpu_custom_call.1} parent=1 // pred_region
      %22 = dma.done [#allocation4], 256
    $region9: #{tpu_custom_call.1} parent=1 // pred_fallthru
      _
    %p23 = scmp.eq.s32.totalorder 0, 0
    // Predicated region
    $region10: #{tpu_custom_call.1} parent=1 // pred_check
      %p24 = pneg %p23
    $region11: #{tpu_custom_call.1} parent=1 // pred_check_branch
      %26 = sbr.rel (%p24) target = $region13
    $region12: #{tpu_custom_call.1} parent=1 // pred_region
      %27 = vst [vmem:[#allocation2] sm:$0xff] 0.0
    $region13: #{tpu_custom_call.1} parent=1 // pred_fallthru
      _
    %v28 = vld [vmem:[#allocation3] sm:$0xff]
    %v29 = vld [vmem:[#allocation3 + $0x8] sm:$0xff]
    %v30 = vld [vmem:[#allocation2] sm:$0xff]
    %33 = vst [vmem:[#allocation1] ss:$4 sm:$0xff] %v28
    %s34 = scalar_lea.vmem [#allocation1], 32
    %35 = vst [vmem:[%s34] ss:$4 sm:$0xff] %v29
    %v36 = vld.sshfl [vmem:[#allocation1] sm:$0xff pattern:$0x73625140]
    %v37 = vld.sshfl [vmem:[#allocation1 + $0x8] sm:$0xff pattern:$0x73625140]
    %v38 = vld.sshfl [vmem:[#allocation1 + $0x10] sm:$0xff pattern:$0x73625140]
    %v39 = vld.sshfl [vmem:[#allocation1 + $0x18] sm:$0xff pattern:$0x73625140]
    %v40 = vld.sshfl [vmem:[#allocation1 + $0x20] sm:$0xff pattern:$0x73625140]
    %v41 = vld.sshfl [vmem:[#allocation1 + $0x28] sm:$0xff pattern:$0x73625140]
    %v42 = vld.sshfl [vmem:[#allocation1 + $0x30] sm:$0xff pattern:$0x73625140]
    %v43 = vld.sshfl [vmem:[#allocation1 + $0x38] sm:$0xff pattern:$0x73625140]
    %vm52 = vcmask 1041408
    %v53 = vsel %vm52, %v36, 0.0
    %v54 = vrot.slane %v53, 4
    %v55 = vadd.f32 %v53, %v54
    %v56 = vrot.slane %v55, 2
    %v57 = vadd.f32 %v55, %v56
    %v58 = vrot.slane %v57, 1
    %v59 = vadd.f32 %v57, %v58
    %v60 = vsel %vm52, %v37, 0.0
    %v61 = vrot.slane %v60, 4
    %v62 = vadd.f32 %v60, %v61
    %v63 = vrot.slane %v62, 2
    %v64 = vadd.f32 %v62, %v63
    %v65 = vrot.slane %v64, 1
    %v66 = vadd.f32 %v64, %v65
    %v67 = vsel %vm52, %v38, 0.0
    %v68 = vrot.slane %v67, 4
    %v69 = vadd.f32 %v67, %v68
    %v70 = vrot.slane %v69, 2
    %v71 = vadd.f32 %v69, %v70
    %v72 = vrot.slane %v71, 1
    %v73 = vadd.f32 %v71, %v72
    %v74 = vsel %vm52, %v39, 0.0
    %v75 = vrot.slane %v74, 4
    %v76 = vadd.f32 %v74, %v75
    %v77 = vrot.slane %v76, 2
    %v78 = vadd.f32 %v76, %v77
    %v79 = vrot.slane %v78, 1
    %v80 = vadd.f32 %v78, %v79
    %v81 = vsel %vm52, %v40, 0.0
    %v82 = vrot.slane %v81, 4
    %v83 = vadd.f32 %v81, %v82
    %v84 = vrot.slane %v83, 2
    %v85 = vadd.f32 %v83, %v84
    %v86 = vrot.slane %v85, 1
    %v87 = vadd.f32 %v85, %v86
    %v88 = vsel %vm52, %v41, 0.0
    %v89 = vrot.slane %v88, 4
    %v90 = vadd.f32 %v88, %v89
    %v91 = vrot.slane %v90, 2
    %v92 = vadd.f32 %v90, %v91
    %v93 = vrot.slane %v92, 1
    %v94 = vadd.f32 %v92, %v93
    %v95 = vsel %vm52, %v42, 0.0
    %v96 = vrot.slane %v95, 4
    %v97 = vadd.f32 %v95, %v96
    %v98 = vrot.slane %v97, 2
    %v99 = vadd.f32 %v97, %v98
    %v100 = vrot.slane %v99, 1
    %v101 = vadd.f32 %v99, %v100
    %v102 = vsel %vm52, %v43, 0.0
    %v103 = vrot.slane %v102, 4
    %v104 = vadd.f32 %v102, %v103
    %v105 = vrot.slane %v104, 2
    %v106 = vadd.f32 %v104, %v105
    %v107 = vrot.slane %v106, 1
    %v108 = vadd.f32 %v106, %v107
    %v117 = vrot.slane %v66, 7
    %v118 = vrot.slane %v73, 6
    %v119 = vrot.slane %v80, 5
    %v120 = vrot.slane %v87, 4
    %v121 = vrot.slane %v94, 3
    %v122 = vrot.slane %v101, 2
    %v123 = vrot.slane %v108, 1
    %vm124 = vcmask 1040384
    %v125 = vsel %vm124, %v59, %v117
    %vm126 = vcmask 1042434
    %v127 = vsel %vm126, %v118, %v119
    %v128 = vsel %vm52, %v125, %v127
    %vm129 = vcmask 1044484
    %v130 = vsel %vm129, %v120, %v121
    %vm131 = vcmask 1046534
    %v132 = vsel %vm131, %v122, %v123
    %vm133 = vcmask 1045508
    %v134 = vsel %vm133, %v130, %v132
    %vm135 = vcmask 1043456
    %v136 = vsel %vm135, %v128, %v134
    %v138 = vadd.f32 %v30, %v136
    %139 = vst [vmem:[#allocation2] sm:$0xff] %v138
    // Predicated region
    $region14: #{tpu_custom_call.1} parent=1 // pred_check
      %p140 = pneg %p23
    $region15: #{tpu_custom_call.1} parent=1 // pred_check_branch
      %142 = sbr.rel (%p140) target = $region17
    $region16: #{tpu_custom_call.1} parent=1 // pred_region
      %v143 = vld [vmem:[#allocation2] sm:$0xff]
      %v144 = vmul.f32 %v143, 0.5
      %145 = vst [vmem:[#allocation6] sm:$0xff] %v144
    $region17: #{tpu_custom_call.1} parent=1 // pred_fallthru
      _
    // Predicated region
    $region18: #{tpu_custom_call.1} parent=1 // pred_check
      _
    $region19: #{tpu_custom_call.1} parent=1 // pred_check_branch
      %147 = sbr.rel (0) target = $region21
    $region20: #{tpu_custom_call.1} parent=1 // pred_region
      %149 = vsyncadd [#allocation5], 0
      %s151 = sshll.u32 [#allocation6], 4
      %s152 = int_to_ptr.vmem [resolvable:$true] %s151
      %s153 = sshll.u32 %s1, 4
      %s154 = int_to_ptr.hbm [resolvable:$true] %s153
      %156 = dma.vmem_to_hbm [thread:$0]  %s152, 128, %s154, [#allocation5]
    $region21: #{tpu_custom_call.1} parent=1 // pred_fallthru
      _
    // Predicated region
    $region22: #{tpu_custom_call.1} parent=1 // pred_check
      _
    $region23: #{tpu_custom_call.1} parent=1 // pred_check_branch
      %158 = sbr.rel (0) target = $region25
    $region24: #{tpu_custom_call.1} parent=1 // pred_region
      %160 = dma.done [#allocation5], 128
    $region25: #{tpu_custom_call.1} parent=1 // pred_fallthru
      _
    %161 = vsyncpa [#allocation4], 1
    %162 = vsyncpa [#allocation5], 1

</llo_original>
